<compile_context>
chip_gen: v6e
topology: v6e:2x2x1
jax: 0.10.0
libtpu: 0.0.40
codegen_flags: <defaults>
</compile_context>

<pallas_src>
import functools
import math

import jax
import jax.numpy as jnp
from jax.experimental import pallas as pl
from jax.experimental.pallas import tpu as pltpu


_LANE = 128
_SUBLANE = 8
_NEG_PAD = -1.0e4  # heatmap-logit pad value -> exactly zero focal contribution


def _tree_fold(v, acc_w):
    """Fold a (rows, tw) block into (rows, acc_w) with a binary add tree.

    Static, 128-aligned lane slices + full-vreg VALU adds only; no cross-lane
    or cross-sublane reductions.  Requires tw % acc_w == 0.
    """
    tw = v.shape[-1]
    parts = [v[:, j * acc_w:(j + 1) * acc_w] for j in range(tw // acc_w)]
    while len(parts) > 1:
        nxt = [parts[i] + parts[i + 1] for i in range(0, len(parts) - 1, 2)]
        if len(parts) % 2:
            nxt.append(parts[-1])
        parts = nxt
    return parts[0]


def _centernetv2_loss_kernel(beta, wm_reps,
                             hm_p_ref, hm_g_ref,
                             sz_p_ref, sz_g_ref,
                             off_p_ref, off_g_ref, wm_ref,
                             focal_acc, npos_acc, sz_acc, off_acc, wm_acc):
    # Fresh accumulators at the start of every (batch, parallel-split) block;
    # the spatial-tile axis (last grid dim) iterates fastest.
    @pl.when(pl.program_id(2) == 0)
    def _init():
        focal_acc[...] = jnp.zeros_like(focal_acc)
        npos_acc[...] = jnp.zeros_like(npos_acc)
        sz_acc[...] = jnp.zeros_like(sz_acc)
        off_acc[...] = jnp.zeros_like(off_acc)
        wm_acc[...] = jnp.zeros_like(wm_acc)

    aw_h = focal_acc.shape[-1]
    aw_r = sz_acc.shape[-1]

    # ---------------- modified focal loss on sigmoid(logits) ----------------
    x = hm_p_ref[...].astype(jnp.float32)              # (8, twh)
    gt = hm_g_ref[...].astype(jnp.float32)             # (8, twh)

    e = jnp.exp(-jnp.abs(x))                           # exp(-|x|) in (0, 1]
    log_p = jnp.minimum(x, 0.0) - jnp.log(1.0 + e)     # log(sigmoid(x)), finite
    log_1mp = log_p - x                                # log(1 - sigmoid(x)), finite
    p = jnp.exp(log_p)                                 # sigmoid(x) on the EUP, no divide

    one_m_p = 1.0 - p
    t = 1.0 - gt
    t2 = t * t
    neg_w = t2 * t2                                    # (1 - gt)^4, VPU only

    pos_term = log_p * (one_m_p * one_m_p)
    neg_term = log_1mp * (p * p) * neg_w
    is_pos = gt == 1.0
    focal_term = jnp.where(is_pos, pos_term, neg_term)

    focal_acc[...] += _tree_fold(focal_term, aw_h)
    npos_acc[...] += _tree_fold(is_pos.astype(jnp.float32), aw_h)

    # ------------- weighted smooth-L1 (Huber) for size / offset -------------
    wm = wm_ref[...].astype(jnp.float32)               # (8 // wm_reps, twr)
    wm_b = jnp.tile(wm, (wm_reps, 1)) if wm_reps > 1 else wm   # (8, twr), hoisted

    def huber(pred_ref, gt_ref):
        d = jnp.abs(pred_ref[...].astype(jnp.float32) -
                    gt_ref[...].astype(jnp.float32))
        return jnp.where(d < beta, (0.5 / beta) * (d * d), d - 0.5 * beta)

    sz_acc[...] += _tree_fold(huber(sz_p_ref, sz_g_ref) * wm_b, aw_r)
    off_acc[...] += _tree_fold(huber(off_p_ref, off_g_ref) * wm_b, aw_r)
    wm_acc[...] += _tree_fold(wm_b, aw_r)


def _pack_rows(x, pad_to, pad_value):
    """(B, C, H, W) -> (B, 8, pad_to/8): flatten, (optionally) right-pad, reshape."""
    b = x.shape[0]
    flat = x.reshape(b, -1)
    n = flat.shape[1]
    if pad_to > n:
        flat = jnp.pad(flat, ((0, 0), (0, pad_to - n)), constant_values=pad_value)
        n = pad_to
    return flat.reshape(b, _SUBLANE, n // _SUBLANE)


def _common_split(widths, target):
    """Number of spatial grid steps S: all widths % S == 0, tiles are 128-multiples."""
    if any(w % _LANE for w in widths):
        return 1
    g = 0
    for w in widths:
        g = math.gcd(g, w // _LANE)
    divisors = [d for d in range(1, g + 1) if g % d == 0]
    for d in divisors:
        if d >= target:
            return d
    return divisors[-1]


@functools.partial(jax.jit, static_argnames=("lambda_offset", "lambda_size", "beta"))
def centernetv2_loss(prediction_features, prediction_sizemap, prediction_offsetmap,
                     label_heatmap, label_sizemap, label_offsetmap, label_weight_mask,
                     lambda_offset=1.0, lambda_size=0.1, beta=1.0):
    f32 = jnp.float32
    B, C, H, W = prediction_features.shape
    _, Cr, _, _ = prediction_sizemap.shape
    Cw = label_weight_mask.shape[1]
    HW = H * W
    if Cw not in (1, Cr):
        raise ValueError("label_weight_mask channels must be 1 or match the regression maps")

    n_hm = C * HW
    n_reg = Cr * HW

    # Can the (non-broadcast) weight mask be repacked so it lines up row-for-row
    # with the (B, 8, Cr*HW/8) repacking of the regression maps?
    compact_wm = (Cw == 1 and _SUBLANE % Cr == 0 and HW % (_SUBLANE // Cr) == 0)
    ok_nopad = (n_hm % _SUBLANE == 0 and n_reg % _SUBLANE == 0 and
                (compact_wm or Cw == Cr))

    def _isz(a):
        return a.dtype.itemsize

    bytes_full = (n_hm * (_isz(prediction_features) + _isz(label_heatmap))
                  + n_reg * (_isz(prediction_sizemap) + _isz(label_sizemap)
                             + _isz(prediction_offsetmap) + _isz(label_offsetmap))
                  + (HW if compact_wm else n_reg) * _isz(label_weight_mask))
    BUDGET = 2 << 20     # target double-buffered per-step input footprint
    HARD_CAP = 20 << 20  # must fit comfortably in v7x scoped VMEM (32 MiB)
    s_target = max(1, -(-2 * bytes_full // BUDGET))

    padded = not ok_nopad
    if ok_nopad:
        wh = n_hm // _SUBLANE
        wr = n_reg // _SUBLANE
        s = _common_split([wh, wr], s_target)
        if 2 * bytes_full // s > HARD_CAP:
            padded = True
    if padded:
        # TODO(synk): non-aligned / oversized shapes fall back to materializing a
        # zero-padded copy of each stream (and the broadcast weight mask) in HBM.
        compact_wm = False
        s = s_target
        unit = _SUBLANE * _LANE * s
        wh = (-(-n_hm // unit) * unit) // _SUBLANE
        wr = (-(-n_reg // unit) * unit) // _SUBLANE

    # ---------------- pack streams to 8 dense sublanes ----------------
    hm_p = _pack_rows(prediction_features, _SUBLANE * wh, _NEG_PAD)
    hm_g = _pack_rows(label_heatmap, _SUBLANE * wh, 0.0)
    sz_p = _pack_rows(prediction_sizemap, _SUBLANE * wr, 0.0)
    sz_g = _pack_rows(label_sizemap, _SUBLANE * wr, 0.0)
    off_p = _pack_rows(prediction_offsetmap, _SUBLANE * wr, 0.0)
    off_g = _pack_rows(label_offsetmap, _SUBLANE * wr, 0.0)
    if compact_wm:
        rows_w = _SUBLANE // Cr
        wm = label_weight_mask.reshape(B, rows_w, HW // rows_w)   # width == wr
        wm_reps = Cr
    else:
        wm_full = (label_weight_mask if Cw == Cr
                   else jnp.broadcast_to(label_weight_mask, (B, Cr, H, W)))
        wm = _pack_rows(wm_full, _SUBLANE * wr, 0.0)
        wm_reps = 1

    ins = (hm_p, hm_g, sz_p, sz_g, off_p, off_g, wm)

    # ---------------- grid / specs ----------------
    twh = wh // s
    twr = wr // s
    aw_h = _LANE if twh % _LANE == 0 else twh
    aw_r = _LANE if twr % _LANE == 0 else twr

    p_split = 2 if (s >= 2 and s % 2 == 0) else 1   # 2-way spatial split for v7x dual-TC
    sp = s // p_split
    grid = (B, p_split, sp)

    def in_map(b, p, si):
        return (b, 0, p * sp + si)

    def out_map(b, p, si):
        return (b, p, 0, 0)

    in_specs = [
        pl.BlockSpec((None, _SUBLANE, twh), in_map),      # hm_pred
        pl.BlockSpec((None, _SUBLANE, twh), in_map),      # hm_gt
        pl.BlockSpec((None, _SUBLANE, twr), in_map),      # sz_pred
        pl.BlockSpec((None, _SUBLANE, twr), in_map),      # sz_gt
        pl.BlockSpec((None, _SUBLANE, twr), in_map),      # off_pred
        pl.BlockSpec((None, _SUBLANE, twr), in_map),      # off_gt
        pl.BlockSpec((None, wm.shape[1], twr), in_map),   # weight mask
    ]
    out_specs = [
        pl.BlockSpec((None, None, _SUBLANE, aw_h), out_map),  # focal
        pl.BlockSpec((None, None, _SUBLANE, aw_h), out_map),  # num_pos
        pl.BlockSpec((None, None, _SUBLANE, aw_r), out_map),  # size
        pl.BlockSpec((None, None, _SUBLANE, aw_r), out_map),  # offset
        pl.BlockSpec((None, None, _SUBLANE, aw_r), out_map),  # weight sum
    ]
    out_shape = [
        jax.ShapeDtypeStruct((B, p_split, _SUBLANE, aw_h), f32),
        jax.ShapeDtypeStruct((B, p_split, _SUBLANE, aw_h), f32),
        jax.ShapeDtypeStruct((B, p_split, _SUBLANE, aw_r), f32),
        jax.ShapeDtypeStruct((B, p_split, _SUBLANE, aw_r), f32),
        jax.ShapeDtypeStruct((B, p_split, _SUBLANE, aw_r), f32),
    ]

    hm_elems = B * _SUBLANE * wh
    reg_elems = B * _SUBLANE * wr
    in_bytes = sum(int(a.size) * a.dtype.itemsize for a in ins)
    out_bytes = 4 * B * p_split * _SUBLANE * (2 * aw_h + 3 * aw_r)
    cost = pl.CostEstimate(
        flops=int(20 * hm_elems + 12 * reg_elems),
        transcendentals=int(3 * hm_elems),
        bytes_accessed=int(in_bytes + out_bytes),
    )

    outs = pl.pallas_call(
        functools.partial(_centernetv2_loss_kernel, float(beta), int(wm_reps)),
        grid=grid,
        in_specs=in_specs,
        out_specs=out_specs,
        out_shape=out_shape,
        compiler_params=pltpu.CompilerParams(
            dimension_semantics=("parallel", "parallel", "arbitrary"),
            vmem_limit_bytes=32 * 1024 * 1024),
        cost_estimate=cost,
    )(*ins)

    focal_sum, num_pos, sz_sum, off_sum, wm_sum = [jnp.sum(o) for o in outs]

    # num_pos == 0  =>  focal_sum is the pure negative term, so -focal/max(.,1)
    # already equals -neg_sum; no separate branch needed.
    class_loss = -focal_sum / jnp.maximum(num_pos, 1.0)
    denom = wm_sum + 1e-4           # broadcast-mask denominator convention
    size_loss = sz_sum / denom
    offset_loss = off_sum / denom
    return class_loss + size_loss * lambda_size + offset_loss * lambda_offset


def _reference_loss(pred_hm, pred_sz, pred_off, gt_hm, gt_sz, gt_off, wmask,
                    lambda_offset, lambda_size, beta):
    """Pure-JAX reference with the same (canonical CenterNet) definitions."""
    p = jax.nn.sigmoid(pred_hm.astype(jnp.float32))
    gt = gt_hm.astype(jnp.float32)
    pos = gt == 1.0
    num_pos = jnp.sum(pos.astype(jnp.float32))
    pos_l = jnp.log(jnp.clip(p, 1e-30)) * (1.0 - p) ** 2
    neg_l = jnp.log(jnp.clip(1.0 - p, 1e-30)) * p ** 2 * (1.0 - gt) ** 4
    focal = jnp.sum(jnp.where(pos, pos_l, neg_l))
    class_loss = -focal / jnp.maximum(num_pos, 1.0)

    wmb = jnp.broadcast_to(wmask.astype(jnp.float32), pred_sz.shape)
    denom = jnp.sum(wmb) + 1e-4

    def smooth_l1(pr, g):
        d = jnp.abs(pr.astype(jnp.float32) - g.astype(jnp.float32))
        return jnp.where(d < beta, 0.5 * d * d / beta, d - 0.5 * beta)

    size_loss = jnp.sum(smooth_l1(pred_sz, gt_sz) * wmb) / denom
    offset_loss = jnp.sum(smooth_l1(pred_off, gt_off) * wmb) / denom
    return class_loss + size_loss * lambda_size + offset_loss * lambda_offset


if __name__ == "__main__":
    def make_inputs(key, b, c, cr, h, w):
        ks = jax.random.split(key, 7)
        pred_hm = jax.random.normal(ks[0], (b, c, h, w), jnp.float32)
        pred_sz = jax.random.normal(ks[1], (b, cr, h, w), jnp.float32)
        pred_off = jax.random.normal(ks[2], (b, cr, h, w), jnp.float32)
        u = jax.random.uniform(ks[3], (b, c, h, w), jnp.float32)
        gt_hm = jnp.where(u > 0.98, 1.0, 0.9 * u)      # a few exact-1.0 centers
        gt_sz = jax.random.uniform(ks[4], (b, cr, h, w), jnp.float32) * 4.0
        gt_off = jax.random.uniform(ks[5], (b, cr, h, w), jnp.float32)
        wmask = (jax.random.uniform(ks[6], (b, 1, h, w)) < 0.1).astype(jnp.float32)
        return (pred_hm, pred_sz, pred_off, gt_hm, gt_sz, gt_off, wmask)

    key = jax.random.PRNGKey(0)
    cases = [
        (2, 4, 2, 16, 16),    # canonical small demo (single-tile path)
        (1, 4, 2, 10, 10),    # non-128-aligned widths (full-block path)
        (1, 2, 2, 256, 256),  # tiled path: multi-step accumulation + 2-way spatial split
    ]
    for i, (b, c, cr, h, w) in enumerate(cases):
        args = make_inputs(jax.random.fold_in(key, i), b, c, cr, h, w)
        loss = jax.block_until_ready(
            centernetv2_loss(*args, lambda_offset=1.0, lambda_size=0.1, beta=1.0))
        ref = _reference_loss(*args, 1.0, 0.1, 1.0)
        assert loss.shape == () and bool(jnp.isfinite(loss))
        rel = abs(float(loss) - float(ref)) / max(1.0, abs(float(ref)))
        assert rel < 5e-3, (i, float(loss), float(ref))

    print("KERNEL_OK")
</pallas_src>

<mosaic_0001>
module attributes {stable_mosaic.version = 11 : i64} {
  func.func @_centernetv2_loss_kernel(%arg0: i32, %arg1: i32, %arg2: i32, %arg3: memref<1x8x128xf32, #tpu.memory_space<vmem>>, %arg4: memref<1x8x128xf32, #tpu.memory_space<vmem>>, %arg5: memref<1x8x64xf32, #tpu.memory_space<vmem>>, %arg6: memref<1x8x64xf32, #tpu.memory_space<vmem>>, %arg7: memref<1x8x64xf32, #tpu.memory_space<vmem>>, %arg8: memref<1x8x64xf32, #tpu.memory_space<vmem>>, %arg9: memref<1x4x64xf32, #tpu.memory_space<vmem>>, %arg10: memref<1x1x8x128xf32, #tpu.memory_space<vmem>>, %arg11: memref<1x1x8x128xf32, #tpu.memory_space<vmem>>, %arg12: memref<1x1x8x64xf32, #tpu.memory_space<vmem>>, %arg13: memref<1x1x8x64xf32, #tpu.memory_space<vmem>>, %arg14: memref<1x1x8x64xf32, #tpu.memory_space<vmem>>) attributes {dimension_semantics = [#tpu.dimension_semantics<parallel>, #tpu.dimension_semantics<parallel>, #tpu.dimension_semantics<arbitrary>], iteration_bounds = array<i64: 2, 1, 1>, scalar_prefetch = 0 : i64, scratch_operands = 0 : i64, tpu.core_type = #tpu.core_type<tc>, window_params = [{transform_indices = @transform_0, window_bounds = array<i64: 1, 8, 128>}, {transform_indices = @transform_1, window_bounds = array<i64: 1, 8, 128>}, {transform_indices = @transform_2, window_bounds = array<i64: 1, 8, 64>}, {transform_indices = @transform_3, window_bounds = array<i64: 1, 8, 64>}, {transform_indices = @transform_4, window_bounds = array<i64: 1, 8, 64>}, {transform_indices = @transform_5, window_bounds = array<i64: 1, 8, 64>}, {transform_indices = @transform_6, window_bounds = array<i64: 1, 4, 64>}, {transform_indices = @transform_7, window_bounds = array<i64: 1, 1, 8, 128>}, {transform_indices = @transform_8, window_bounds = array<i64: 1, 1, 8, 128>}, {transform_indices = @transform_9, window_bounds = array<i64: 1, 1, 8, 64>}, {transform_indices = @transform_10, window_bounds = array<i64: 1, 1, 8, 64>}, {transform_indices = @transform_11, window_bounds = array<i64: 1, 1, 8, 64>}]} {
    %c0_i32 = arith.constant 0 : i32
    %0 = arith.cmpi eq, %arg2, %c0_i32 : i32
    %1 = arith.extui %0 : i1 to i32
    %c0_i32_0 = arith.constant 0 : i32
    %2 = arith.cmpi ne, %1, %c0_i32_0 : i32
    scf.if %2 {
      %cst_72 = arith.constant 0.000000e+00 : f32
      %98 = vector.broadcast %cst_72 : f32 to vector<8x128xf32>
      %c0_73 = arith.constant 0 : index
      %c0_74 = arith.constant 0 : index
      %c0_75 = arith.constant 0 : index
      %c0_76 = arith.constant 0 : index
      %99 = vector.load %arg10[%c0_73, %c0_74, %c0_75, %c0_76] : memref<1x1x8x128xf32, #tpu.memory_space<vmem>>, vector<1x1x8x128xf32>
      %100 = vector.shape_cast %99 : vector<1x1x8x128xf32> to vector<8x128xf32>
      %101 = vector.shape_cast %98 : vector<8x128xf32> to vector<1x1x8x128xf32>
      tpu.vector_store %arg10[%c0_73, %c0_74, %c0_75, %c0_76], %101 {strides = array<i32>} : memref<1x1x8x128xf32, #tpu.memory_space<vmem>>, vector<1x1x8x128xf32>,
      %cst_77 = arith.constant 0.000000e+00 : f32
      %102 = vector.broadcast %cst_77 : f32 to vector<8x128xf32>
      %c0_78 = arith.constant 0 : index
      %c0_79 = arith.constant 0 : index
      %c0_80 = arith.constant 0 : index
      %c0_81 = arith.constant 0 : index
      %103 = vector.load %arg11[%c0_78, %c0_79, %c0_80, %c0_81] : memref<1x1x8x128xf32, #tpu.memory_space<vmem>>, vector<1x1x8x128xf32>
      %104 = vector.shape_cast %103 : vector<1x1x8x128xf32> to vector<8x128xf32>
      %105 = vector.shape_cast %102 : vector<8x128xf32> to vector<1x1x8x128xf32>
      tpu.vector_store %arg11[%c0_78, %c0_79, %c0_80, %c0_81], %105 {strides = array<i32>} : memref<1x1x8x128xf32, #tpu.memory_space<vmem>>, vector<1x1x8x128xf32>,
      %cst_82 = arith.constant 0.000000e+00 : f32
      %106 = vector.broadcast %cst_82 : f32 to vector<8x64xf32>
      %c0_83 = arith.constant 0 : index
      %c0_84 = arith.constant 0 : index
      %c0_85 = arith.constant 0 : index
      %c0_86 = arith.constant 0 : index
      %107 = vector.load %arg12[%c0_83, %c0_84, %c0_85, %c0_86] : memref<1x1x8x64xf32, #tpu.memory_space<vmem>>, vector<1x1x8x64xf32>
      %108 = vector.shape_cast %107 : vector<1x1x8x64xf32> to vector<8x64xf32>
      %109 = vector.shape_cast %106 : vector<8x64xf32> to vector<1x1x8x64xf32>
      tpu.vector_store %arg12[%c0_83, %c0_84, %c0_85, %c0_86], %109 {strides = array<i32>} : memref<1x1x8x64xf32, #tpu.memory_space<vmem>>, vector<1x1x8x64xf32>,
      %cst_87 = arith.constant 0.000000e+00 : f32
      %110 = vector.broadcast %cst_87 : f32 to vector<8x64xf32>
      %c0_88 = arith.constant 0 : index
      %c0_89 = arith.constant 0 : index
      %c0_90 = arith.constant 0 : index
      %c0_91 = arith.constant 0 : index
      %111 = vector.load %arg13[%c0_88, %c0_89, %c0_90, %c0_91] : memref<1x1x8x64xf32, #tpu.memory_space<vmem>>, vector<1x1x8x64xf32>
      %112 = vector.shape_cast %111 : vector<1x1x8x64xf32> to vector<8x64xf32>
      %113 = vector.shape_cast %110 : vector<8x64xf32> to vector<1x1x8x64xf32>
      tpu.vector_store %arg13[%c0_88, %c0_89, %c0_90, %c0_91], %113 {strides = array<i32>} : memref<1x1x8x64xf32, #tpu.memory_space<vmem>>, vector<1x1x8x64xf32>,
      %cst_92 = arith.constant 0.000000e+00 : f32
      %114 = vector.broadcast %cst_92 : f32 to vector<8x64xf32>
      %c0_93 = arith.constant 0 : index
      %c0_94 = arith.constant 0 : index
      %c0_95 = arith.constant 0 : index
      %c0_96 = arith.constant 0 : index
      %115 = vector.load %arg14[%c0_93, %c0_94, %c0_95, %c0_96] : memref<1x1x8x64xf32, #tpu.memory_space<vmem>>, vector<1x1x8x64xf32>
      %116 = vector.shape_cast %115 : vector<1x1x8x64xf32> to vector<8x64xf32>
      %117 = vector.shape_cast %114 : vector<8x64xf32> to vector<1x1x8x64xf32>
      tpu.vector_store %arg14[%c0_93, %c0_94, %c0_95, %c0_96], %117 {strides = array<i32>} : memref<1x1x8x64xf32, #tpu.memory_space<vmem>>, vector<1x1x8x64xf32>,
    } else {
    }
    %c0 = arith.constant 0 : index
    %c0_1 = arith.constant 0 : index
    %c0_2 = arith.constant 0 : index
    %3 = vector.load %arg3[%c0, %c0_1, %c0_2] : memref<1x8x128xf32, #tpu.memory_space<vmem>>, vector<1x8x128xf32>
    %4 = vector.shape_cast %3 : vector<1x8x128xf32> to vector<8x128xf32>
    %c0_3 = arith.constant 0 : index
    %c0_4 = arith.constant 0 : index
    %c0_5 = arith.constant 0 : index
    %5 = vector.load %arg4[%c0_3, %c0_4, %c0_5] : memref<1x8x128xf32, #tpu.memory_space<vmem>>, vector<1x8x128xf32>
    %6 = vector.shape_cast %5 : vector<1x8x128xf32> to vector<8x128xf32>
    %7 = math.absf %4 : vector<8x128xf32>
    %cst = arith.constant 0.000000e+00 : f32
    %8 = vector.broadcast %cst : f32 to vector<8x128xf32>
    %9 = arith.subf %8, %7 : vector<8x128xf32>
    %10 = math.exp %9 : vector<8x128xf32>
    %cst_6 = arith.constant 0.000000e+00 : f32
    %11 = vector.broadcast %cst_6 : f32 to vector<8x128xf32>
    %12 = arith.minimumf %4, %11 : vector<8x128xf32>
    %cst_7 = arith.constant 1.000000e+00 : f32
    %13 = vector.broadcast %cst_7 : f32 to vector<8x128xf32>
    %14 = arith.addf %13, %10 : vector<8x128xf32>
    %15 = math.log %14 : vector<8x128xf32>
    %16 = arith.subf %12, %15 : vector<8x128xf32>
    %17 = arith.subf %16, %4 : vector<8x128xf32>
    %18 = math.exp %16 : vector<8x128xf32>
    %cst_8 = arith.constant 1.000000e+00 : f32
    %19 = vector.broadcast %cst_8 : f32 to vector<8x128xf32>
    %20 = arith.subf %19, %18 : vector<8x128xf32>
    %cst_9 = arith.constant 1.000000e+00 : f32
    %21 = vector.broadcast %cst_9 : f32 to vector<8x128xf32>
    %22 = arith.subf %21, %6 : vector<8x128xf32>
    %23 = arith.mulf %22, %22 : vector<8x128xf32>
    %24 = arith.mulf %23, %23 : vector<8x128xf32>
    %25 = arith.mulf %20, %20 : vector<8x128xf32>
    %26 = arith.mulf %16, %25 : vector<8x128xf32>
    %27 = arith.mulf %18, %18 : vector<8x128xf32>
    %28 = arith.mulf %17, %27 : vector<8x128xf32>
    %29 = arith.mulf %28, %24 : vector<8x128xf32>
    %cst_10 = arith.constant 1.000000e+00 : f32
    %30 = vector.broadcast %cst_10 : f32 to vector<8x128xf32>
    %31 = arith.cmpf oeq, %6, %30 : vector<8x128xf32>
    %32 = arith.select %31, %26, %29 : vector<8x128xi1>, vector<8x128xf32>
    %c0_11 = arith.constant 0 : index
    %c0_12 = arith.constant 0 : index
    %c0_13 = arith.constant 0 : index
    %c0_14 = arith.constant 0 : index
    %33 = vector.load %arg10[%c0_11, %c0_12, %c0_13, %c0_14] : memref<1x1x8x128xf32, #tpu.memory_space<vmem>>, vector<1x1x8x128xf32>
    %34 = vector.shape_cast %33 : vector<1x1x8x128xf32> to vector<8x128xf32>
    %35 = arith.addf %34, %32 : vector<8x128xf32>
    %c0_15 = arith.constant 0 : index
    %c0_16 = arith.constant 0 : index
    %c0_17 = arith.constant 0 : index
    %c0_18 = arith.constant 0 : index
    %36 = vector.load %arg10[%c0_15, %c0_16, %c0_17, %c0_18] : memref<1x1x8x128xf32, #tpu.memory_space<vmem>>, vector<1x1x8x128xf32>
    %37 = vector.shape_cast %36 : vector<1x1x8x128xf32> to vector<8x128xf32>
    %38 = vector.shape_cast %35 : vector<8x128xf32> to vector<1x1x8x128xf32>
    tpu.vector_store %arg10[%c0_15, %c0_16, %c0_17, %c0_18], %38 {strides = array<i32>} : memref<1x1x8x128xf32, #tpu.memory_space<vmem>>, vector<1x1x8x128xf32>,
    %c0_19 = arith.constant 0 : index
    %c0_20 = arith.constant 0 : index
    %c0_21 = arith.constant 0 : index
    %c0_22 = arith.constant 0 : index
    %39 = vector.load %arg11[%c0_19, %c0_20, %c0_21, %c0_22] : memref<1x1x8x128xf32, #tpu.memory_space<vmem>>, vector<1x1x8x128xf32>
    %40 = vector.shape_cast %39 : vector<1x1x8x128xf32> to vector<8x128xf32>
    %41 = arith.extui %31 : vector<8x128xi1> to vector<8x128xi32>
    %42 = arith.sitofp %41 : vector<8x128xi32> to vector<8x128xf32>
    %43 = arith.addf %40, %42 : vector<8x128xf32>
    %c0_23 = arith.constant 0 : index
    %c0_24 = arith.constant 0 : index
    %c0_25 = arith.constant 0 : index
    %c0_26 = arith.constant 0 : index
    %44 = vector.load %arg11[%c0_23, %c0_24, %c0_25, %c0_26] : memref<1x1x8x128xf32, #tpu.memory_space<vmem>>, vector<1x1x8x128xf32>
    %45 = vector.shape_cast %44 : vector<1x1x8x128xf32> to vector<8x128xf32>
    %46 = vector.shape_cast %43 : vector<8x128xf32> to vector<1x1x8x128xf32>
    tpu.vector_store %arg11[%c0_23, %c0_24, %c0_25, %c0_26], %46 {strides = array<i32>} : memref<1x1x8x128xf32, #tpu.memory_space<vmem>>, vector<1x1x8x128xf32>,
    %c0_27 = arith.constant 0 : index
    %c0_28 = arith.constant 0 : index
    %c0_29 = arith.constant 0 : index
    %47 = vector.load %arg9[%c0_27, %c0_28, %c0_29] : memref<1x4x64xf32, #tpu.memory_space<vmem>>, vector<1x4x64xf32>
    %48 = vector.shape_cast %47 : vector<1x4x64xf32> to vector<4x64xf32>
    %49 = tpu.concatenate %48, %48 in 0 : vector<4x64xf32>, vector<4x64xf32> -> vector<8x64xf32>
    %c0_30 = arith.constant 0 : index
    %c0_31 = arith.constant 0 : index
    %c0_32 = arith.constant 0 : index
    %c0_33 = arith.constant 0 : index
    %50 = vector.load %arg12[%c0_30, %c0_31, %c0_32, %c0_33] : memref<1x1x8x64xf32, #tpu.memory_space<vmem>>, vector<1x1x8x64xf32>
    %51 = vector.shape_cast %50 : vector<1x1x8x64xf32> to vector<8x64xf32>
    %c0_34 = arith.constant 0 : index
    %c0_35 = arith.constant 0 : index
    %c0_36 = arith.constant 0 : index
    %52 = vector.load %arg5[%c0_34, %c0_35, %c0_36] : memref<1x8x64xf32, #tpu.memory_space<vmem>>, vector<1x8x64xf32>
    %53 = vector.shape_cast %52 : vector<1x8x64xf32> to vector<8x64xf32>
    %c0_37 = arith.constant 0 : index
    %c0_38 = arith.constant 0 : index
    %c0_39 = arith.constant 0 : index
    %54 = vector.load %arg6[%c0_37, %c0_38, %c0_39] : memref<1x8x64xf32, #tpu.memory_space<vmem>>, vector<1x8x64xf32>
    %55 = vector.shape_cast %54 : vector<1x8x64xf32> to vector<8x64xf32>
    %56 = arith.subf %53, %55 : vector<8x64xf32>
    %57 = math.absf %56 : vector<8x64xf32>
    %cst_40 = arith.constant 1.000000e+00 : f32
    %58 = vector.broadcast %cst_40 : f32 to vector<8x64xf32>
    %59 = arith.cmpf olt, %57, %58 : vector<8x64xf32>
    %60 = arith.mulf %57, %57 : vector<8x64xf32>
    %cst_41 = arith.constant 5.000000e-01 : f32
    %61 = vector.broadcast %cst_41 : f32 to vector<8x64xf32>
    %62 = arith.mulf %61, %60 : vector<8x64xf32>
    %cst_42 = arith.constant 5.000000e-01 : f32
    %63 = vector.broadcast %cst_42 : f32 to vector<8x64xf32>
    %64 = arith.subf %57, %63 : vector<8x64xf32>
    %65 = arith.select %59, %62, %64 : vector<8x64xi1>, vector<8x64xf32>
    %66 = arith.mulf %65, %49 : vector<8x64xf32>
    %67 = arith.addf %51, %66 : vector<8x64xf32>
    %c0_43 = arith.constant 0 : index
    %c0_44 = arith.constant 0 : index
    %c0_45 = arith.constant 0 : index
    %c0_46 = arith.constant 0 : index
    %68 = vector.load %arg12[%c0_43, %c0_44, %c0_45, %c0_46] : memref<1x1x8x64xf32, #tpu.memory_space<vmem>>, vector<1x1x8x64xf32>
    %69 = vector.shape_cast %68 : vector<1x1x8x64xf32> to vector<8x64xf32>
    %70 = vector.shape_cast %67 : vector<8x64xf32> to vector<1x1x8x64xf32>
    tpu.vector_store %arg12[%c0_43, %c0_44, %c0_45, %c0_46], %70 {strides = array<i32>} : memref<1x1x8x64xf32, #tpu.memory_space<vmem>>, vector<1x1x8x64xf32>,
    %c0_47 = arith.constant 0 : index
    %c0_48 = arith.constant 0 : index
    %c0_49 = arith.constant 0 : index
    %c0_50 = arith.constant 0 : index
    %71 = vector.load %arg13[%c0_47, %c0_48, %c0_49, %c0_50] : memref<1x1x8x64xf32, #tpu.memory_space<vmem>>, vector<1x1x8x64xf32>
    %72 = vector.shape_cast %71 : vector<1x1x8x64xf32> to vector<8x64xf32>
    %c0_51 = arith.constant 0 : index
    %c0_52 = arith.constant 0 : index
    %c0_53 = arith.constant 0 : index
    %73 = vector.load %arg7[%c0_51, %c0_52, %c0_53] : memref<1x8x64xf32, #tpu.memory_space<vmem>>, vector<1x8x64xf32>
    %74 = vector.shape_cast %73 : vector<1x8x64xf32> to vector<8x64xf32>
    %c0_54 = arith.constant 0 : index
    %c0_55 = arith.constant 0 : index
    %c0_56 = arith.constant 0 : index
    %75 = vector.load %arg8[%c0_54, %c0_55, %c0_56] : memref<1x8x64xf32, #tpu.memory_space<vmem>>, vector<1x8x64xf32>
    %76 = vector.shape_cast %75 : vector<1x8x64xf32> to vector<8x64xf32>
    %77 = arith.subf %74, %76 : vector<8x64xf32>
    %78 = math.absf %77 : vector<8x64xf32>
    %cst_57 = arith.constant 1.000000e+00 : f32
    %79 = vector.broadcast %cst_57 : f32 to vector<8x64xf32>
    %80 = arith.cmpf olt, %78, %79 : vector<8x64xf32>
    %81 = arith.mulf %78, %78 : vector<8x64xf32>
    %cst_58 = arith.constant 5.000000e-01 : f32
    %82 = vector.broadcast %cst_58 : f32 to vector<8x64xf32>
    %83 = arith.mulf %82, %81 : vector<8x64xf32>
    %cst_59 = arith.constant 5.000000e-01 : f32
    %84 = vector.broadcast %cst_59 : f32 to vector<8x64xf32>
    %85 = arith.subf %78, %84 : vector<8x64xf32>
    %86 = arith.select %80, %83, %85 : vector<8x64xi1>, vector<8x64xf32>
    %87 = arith.mulf %86, %49 : vector<8x64xf32>
    %88 = arith.addf %72, %87 : vector<8x64xf32>
    %c0_60 = arith.constant 0 : index
    %c0_61 = arith.constant 0 : index
    %c0_62 = arith.constant 0 : index
    %c0_63 = arith.constant 0 : index
    %89 = vector.load %arg13[%c0_60, %c0_61, %c0_62, %c0_63] : memref<1x1x8x64xf32, #tpu.memory_space<vmem>>, vector<1x1x8x64xf32>
    %90 = vector.shape_cast %89 : vector<1x1x8x64xf32> to vector<8x64xf32>
    %91 = vector.shape_cast %88 : vector<8x64xf32> to vector<1x1x8x64xf32>
    tpu.vector_store %arg13[%c0_60, %c0_61, %c0_62, %c0_63], %91 {strides = array<i32>} : memref<1x1x8x64xf32, #tpu.memory_space<vmem>>, vector<1x1x8x64xf32>,
    %c0_64 = arith.constant 0 : index
    %c0_65 = arith.constant 0 : index
    %c0_66 = arith.constant 0 : index
    %c0_67 = arith.constant 0 : index
    %92 = vector.load %arg14[%c0_64, %c0_65, %c0_66, %c0_67] : memref<1x1x8x64xf32, #tpu.memory_space<vmem>>, vector<1x1x8x64xf32>
    %93 = vector.shape_cast %92 : vector<1x1x8x64xf32> to vector<8x64xf32>
    %94 = arith.addf %93, %49 : vector<8x64xf32>
    %c0_68 = arith.constant 0 : index
    %c0_69 = arith.constant 0 : index
    %c0_70 = arith.constant 0 : index
    %c0_71 = arith.constant 0 : index
    %95 = vector.load %arg14[%c0_68, %c0_69, %c0_70, %c0_71] : memref<1x1x8x64xf32, #tpu.memory_space<vmem>>, vector<1x1x8x64xf32>
    %96 = vector.shape_cast %95 : vector<1x1x8x64xf32> to vector<8x64xf32>
    %97 = vector.shape_cast %94 : vector<8x64xf32> to vector<1x1x8x64xf32>
    tpu.vector_store %arg14[%c0_68, %c0_69, %c0_70, %c0_71], %97 {strides = array<i32>} : memref<1x1x8x64xf32, #tpu.memory_space<vmem>>, vector<1x1x8x64xf32>,
    return
  }
  func.func @transform_0(%arg0: i32, %arg1: i32, %arg2: i32) -> (i32, i32, i32) {
    %c1_i32 = arith.constant 1 : i32
    %0 = arith.muli %arg1, %c1_i32 : i32
    %1 = arith.addi %0, %arg2 : i32
    %c0_i32 = arith.constant 0 : i32
    %c0_i32_0 = arith.constant 0 : i32
    return %arg0, %c0_i32, %1 : i32, i32, i32
  }
  func.func @transform_1(%arg0: i32, %arg1: i32, %arg2: i32) -> (i32, i32, i32) {
    %c1_i32 = arith.constant 1 : i32
    %0 = arith.muli %arg1, %c1_i32 : i32
    %1 = arith.addi %0, %arg2 : i32
    %c0_i32 = arith.constant 0 : i32
    %c0_i32_0 = arith.constant 0 : i32
    return %arg0, %c0_i32, %1 : i32, i32, i32
  }
  func.func @transform_2(%arg0: i32, %arg1: i32, %arg2: i32) -> (i32, i32, i32) {
    %c1_i32 = arith.constant 1 : i32
    %0 = arith.muli %arg1, %c1_i32 : i32
    %1 = arith.addi %0, %arg2 : i32
    %c0_i32 = arith.constant 0 : i32
    %c0_i32_0 = arith.constant 0 : i32
    return %arg0, %c0_i32, %1 : i32, i32, i32
  }
  func.func @transform_3(%arg0: i32, %arg1: i32, %arg2: i32) -> (i32, i32, i32) {
    %c1_i32 = arith.constant 1 : i32
    %0 = arith.muli %arg1, %c1_i32 : i32
    %1 = arith.addi %0, %arg2 : i32
    %c0_i32 = arith.constant 0 : i32
    %c0_i32_0 = arith.constant 0 : i32
    return %arg0, %c0_i32, %1 : i32, i32, i32
  }
  func.func @transform_4(%arg0: i32, %arg1: i32, %arg2: i32) -> (i32, i32, i32) {
    %c1_i32 = arith.constant 1 : i32
    %0 = arith.muli %arg1, %c1_i32 : i32
    %1 = arith.addi %0, %arg2 : i32
    %c0_i32 = arith.constant 0 : i32
    %c0_i32_0 = arith.constant 0 : i32
    return %arg0, %c0_i32, %1 : i32, i32, i32
  }
  func.func @transform_5(%arg0: i32, %arg1: i32, %arg2: i32) -> (i32, i32, i32) {
    %c1_i32 = arith.constant 1 : i32
    %0 = arith.muli %arg1, %c1_i32 : i32
    %1 = arith.addi %0, %arg2 : i32
    %c0_i32 = arith.constant 0 : i32
    %c0_i32_0 = arith.constant 0 : i32
    return %arg0, %c0_i32, %1 : i32, i32, i32
  }
  func.func @transform_6(%arg0: i32, %arg1: i32, %arg2: i32) -> (i32, i32, i32) {
    %c1_i32 = arith.constant 1 : i32
    %0 = arith.muli %arg1, %c1_i32 : i32
    %1 = arith.addi %0, %arg2 : i32
    %c0_i32 = arith.constant 0 : i32
    %c0_i32_0 = arith.constant 0 : i32
    return %arg0, %c0_i32, %1 : i32, i32, i32
  }
  func.func @transform_7(%arg0: i32, %arg1: i32, %arg2: i32) -> (i32, i32, i32, i32) {
    %c0_i32 = arith.constant 0 : i32
    %c0_i32_0 = arith.constant 0 : i32
    %c0_i32_1 = arith.constant 0 : i32
    return %arg0, %arg1, %c0_i32, %c0_i32_0 : i32, i32, i32, i32
  }
  func.func @transform_8(%arg0: i32, %arg1: i32, %arg2: i32) -> (i32, i32, i32, i32) {
    %c0_i32 = arith.constant 0 : i32
    %c0_i32_0 = arith.constant 0 : i32
    %c0_i32_1 = arith.constant 0 : i32
    return %arg0, %arg1, %c0_i32, %c0_i32_0 : i32, i32, i32, i32
  }
  func.func @transform_9(%arg0: i32, %arg1: i32, %arg2: i32) -> (i32, i32, i32, i32) {
    %c0_i32 = arith.constant 0 : i32
    %c0_i32_0 = arith.constant 0 : i32
    %c0_i32_1 = arith.constant 0 : i32
    return %arg0, %arg1, %c0_i32, %c0_i32_0 : i32, i32, i32, i32
  }
  func.func @transform_10(%arg0: i32, %arg1: i32, %arg2: i32) -> (i32, i32, i32, i32) {
    %c0_i32 = arith.constant 0 : i32
    %c0_i32_0 = arith.constant 0 : i32
    %c0_i32_1 = arith.constant 0 : i32
    return %arg0, %arg1, %c0_i32, %c0_i32_0 : i32, i32, i32, i32
  }
  func.func @transform_11(%arg0: i32, %arg1: i32, %arg2: i32) -> (i32, i32, i32, i32) {
    %c0_i32 = arith.constant 0 : i32
    %c0_i32_0 = arith.constant 0 : i32
    %c0_i32_1 = arith.constant 0 : i32
    return %arg0, %arg1, %c0_i32, %c0_i32_0 : i32, i32, i32, i32
  }
}

</mosaic_0001>

<llo_original>
// kernel: centernetv2_loss.1
$region0: #{centernetv2_loss.1}
  #allocation0 [shape = 'u32[]', space=smem, size = 0x4, offset = 0x4, fixed_abs, tag = 'smem constant byte address 0x4 - core index']
  #allocation1 [shape = 'u32[144,128]{1,0:T(1,128)}', space=vmem, size = 0x12000, scoped, tag = 'internal scratch']
  %s0 = inlined_call_operand.vmem [shape: f32[2,8,128], index: 0, kind: input, shape index: {}]
  %s1 = inlined_call_operand.vmem [shape: f32[2,8,128], index: 1, kind: input, shape index: {}]
  %s2 = inlined_call_operand.vmem [shape: f32[2,8,64], index: 2, kind: input, shape index: {}]
  %s3 = inlined_call_operand.vmem [shape: f32[2,8,64], index: 3, kind: input, shape index: {}]
  %s4 = inlined_call_operand.vmem [shape: f32[2,8,64], index: 4, kind: input, shape index: {}]
  %s5 = inlined_call_operand.vmem [shape: f32[2,8,64], index: 5, kind: input, shape index: {}]
  %s6 = inlined_call_operand.vmem [shape: f32[2,4,64], index: 6, kind: input, shape index: {}]
  %s7 = inlined_call_operand.vmem [shape: f32[2,1,8,128], index: 7, kind: output, shape index: {0}]
  %s8 = inlined_call_operand.vmem [shape: f32[2,1,8,128], index: 8, kind: output, shape index: {1}]
  %s9 = inlined_call_operand.vmem [shape: f32[2,1,8,64], index: 9, kind: output, shape index: {2}]
  %s10 = inlined_call_operand.vmem [shape: f32[2,1,8,64], index: 10, kind: output, shape index: {3}]
  %s11 = inlined_call_operand.vmem [shape: f32[2,1,8,64], index: 11, kind: output, shape index: {4}]
  %12 = xla_tuple %s7, %s8, %s9, %s10, %s11
  %s13 = sld [smem:[#allocation0]]
  $region97: #{centernetv2_loss.1} parent=0
    _
  %s15 = ssub.s32 1, %s13
  %s16 = scalar_select 0, %s15, %s13
  loop: start=0, step=1, limit=4
  $region2: #{centernetv2_loss.1} parent=0 // loop_pre_header
    _
  $region3: #{centernetv2_loss.1} parent=0 // loop_header
    %s18 = sphi 0, %s22
    %p19 = scmp.ge.s32.totalorder %s18, 4
    %s25 = sphi 0, %s44
    %s26 = sphi 0, %s40
    %s27 = sphi 0, %s36
    %s28 = sphi 0, %s25
    %s29 = sphi 0, %s26
    %s30 = sphi 0, %s27
    %s31 = sphi 0, %s28
    %s32 = sphi 0, %s29
    %s33 = sphi 0, %s30
    %s51 = sphi 0, %s53
    %s54 = sphi 0, %s51
    %s55 = sphi 0, %s54
    %s71 = sphi 0, %s55
    %s81 = sphi 0, %s83
    %s84 = sphi 0, %s81
    %s85 = sphi 0, %s84
    %s101 = sphi 0, %s85
    %s111 = sphi 0, %s113
    %s114 = sphi 0, %s111
    %s115 = sphi 0, %s114
    %s131 = sphi 0, %s115
    %s141 = sphi 0, %s143
    %s144 = sphi 0, %s141
    %s145 = sphi 0, %s144
    %s161 = sphi 0, %s145
    %s171 = sphi 0, %s173
    %s174 = sphi 0, %s171
    %s175 = sphi 0, %s174
    %s191 = sphi 0, %s175
    %s201 = sphi 0, %s203
    %s204 = sphi 0, %s201
    %s205 = sphi 0, %s204
    %s221 = sphi 0, %s205
    %s231 = sphi 0, %s233
    %s234 = sphi 0, %s231
    %s235 = sphi 0, %s234
    %s251 = sphi 0, %s235
    %s259 = sphi 0, %s261
    %s262 = sphi 0, %s259
    %s263 = sphi 0, %s262
    %s279 = sphi 0, %s263
    %s287 = sphi 0, %s289
    %s290 = sphi 0, %s287
    %s291 = sphi 0, %s290
    %s307 = sphi 0, %s291
    %s315 = sphi 0, %s317
    %s318 = sphi 0, %s315
    %s319 = sphi 0, %s318
    %s335 = sphi 0, %s319
    %s343 = sphi 0, %s345
    %s346 = sphi 0, %s343
    %s347 = sphi 0, %s346
    %s363 = sphi 0, %s347
    %s371 = sphi 0, %s373
    %s374 = sphi 0, %s371
    %s375 = sphi 0, %s374
    %s391 = sphi 0, %s375
  $region4: #{centernetv2_loss.1} parent=0 // loop_header_branch
    %21 = sbr.rel (%p19) target = $region8
  $region5: #{centernetv2_loss.1} parent=0 // loop_body
    %s23 = ssub.s32 %s18, 1
    %s24 = ssub.s32 %s18, 2
    %s34 = sadd.s32 1, %s27
    %p35 = scmp.ge.s32.totalorder %s34, 1
    %s36 = scalar_select %p35, 0, %s34
    %s37 = sadd.s32 1, %s26
    %s38 = scalar_select %p35, %s37, %s26
    %p39 = scmp.ge.s32.totalorder %s38, 1
    %s40 = scalar_select %p39, 0, %s38
    %s41 = sadd.s32 1, %s25
    %s42 = scalar_select %p39, %s41, %s25
    %p43 = scmp.ge.s32.totalorder %s42, 2
    %s44 = scalar_select %p43, 0, %s42
    %s45 = sadd.s32 %s26, %s27
    %s46 = sadd.s32 %s40, %s36
    %s47 = ssub.s32 %s25, %s44
    %s48 = ssub.s32 %s45, %s46
    %s49 = sor.u32 %s47, %s48
    %p50 = scmp.eq.s32.totalorder %s49, 0
    %s52 = sadd.s32 %s51, 1
    %s53 = scalar_select %p50, %s51, %s52
    %p56 = pneg %p50
    %p57 = scmp.eq.s32.totalorder %s18, 1
    %p58 = por %p56, %p57
    %p59 = scmp.ne.s32.totalorder %s51, %s54
    %p60 = scmp.eq.s32.totalorder %s18, 0
    %p61 = por %p59, %p60
    %p62 = scmp.ne.s32.totalorder %s51, %s54
    %p63 = scmp.eq.s32.totalorder %s23, 1
    %p64 = por %p62, %p63
    %p65 = scmp.ne.s32.totalorder %s54, %s55
    %p66 = scmp.eq.s32.totalorder %s23, 0
    %p67 = por %p65, %p66
    %p68 = scmp.ne.s32.totalorder %s54, %s55
    %p69 = scmp.eq.s32.totalorder %s24, 1
    %p70 = por %p68, %p69
    %p72 = scmp.ne.s32.totalorder %s55, %s71
    %p73 = scmp.eq.s32.totalorder %s24, 0
    %p74 = por %p72, %p73
    %s75 = sadd.s32 %s26, %s27
    %s76 = sadd.s32 %s40, %s36
    %s77 = ssub.s32 %s25, %s44
    %s78 = ssub.s32 %s75, %s76
    %s79 = sor.u32 %s77, %s78
    %p80 = scmp.eq.s32.totalorder %s79, 0
    %s82 = sadd.s32 %s81, 1
    %s83 = scalar_select %p80, %s81, %s82
    %p86 = pneg %p80
    %p87 = scmp.eq.s32.totalorder %s18, 1
    %p88 = por %p86, %p87
    %p89 = scmp.ne.s32.totalorder %s81, %s84
    %p90 = scmp.eq.s32.totalorder %s18, 0
    %p91 = por %p89, %p90
    %p92 = scmp.ne.s32.totalorder %s81, %s84
    %p93 = scmp.eq.s32.totalorder %s23, 1
    %p94 = por %p92, %p93
    %p95 = scmp.ne.s32.totalorder %s84, %s85
    %p96 = scmp.eq.s32.totalorder %s23, 0
    %p97 = por %p95, %p96
    %p98 = scmp.ne.s32.totalorder %s84, %s85
    %p99 = scmp.eq.s32.totalorder %s24, 1
    %p100 = por %p98, %p99
    %p102 = scmp.ne.s32.totalorder %s85, %s101
    %p103 = scmp.eq.s32.totalorder %s24, 0
    %p104 = por %p102, %p103
    %s105 = sadd.s32 %s26, %s27
    %s106 = sadd.s32 %s40, %s36
    %s107 = ssub.s32 %s25, %s44
    %s108 = ssub.s32 %s105, %s106
    %s109 = sor.u32 %s107, %s108
    %p110 = scmp.eq.s32.totalorder %s109, 0
    %s112 = sadd.s32 %s111, 1
    %s113 = scalar_select %p110, %s111, %s112
    %p116 = pneg %p110
    %p117 = scmp.eq.s32.totalorder %s18, 1
    %p118 = por %p116, %p117
    %p119 = scmp.ne.s32.totalorder %s111, %s114
    %p120 = scmp.eq.s32.totalorder %s18, 0
    %p121 = por %p119, %p120
    %p122 = scmp.ne.s32.totalorder %s111, %s114
    %p123 = scmp.eq.s32.totalorder %s23, 1
    %p124 = por %p122, %p123
    %p125 = scmp.ne.s32.totalorder %s114, %s115
    %p126 = scmp.eq.s32.totalorder %s23, 0
    %p127 = por %p125, %p126
    %p128 = scmp.ne.s32.totalorder %s114, %s115
    %p129 = scmp.eq.s32.totalorder %s24, 1
    %p130 = por %p128, %p129
    %p132 = scmp.ne.s32.totalorder %s115, %s131
    %p133 = scmp.eq.s32.totalorder %s24, 0
    %p134 = por %p132, %p133
    %s135 = sadd.s32 %s26, %s27
    %s136 = sadd.s32 %s40, %s36
    %s137 = ssub.s32 %s25, %s44
    %s138 = ssub.s32 %s135, %s136
    %s139 = sor.u32 %s137, %s138
    %p140 = scmp.eq.s32.totalorder %s139, 0
    %s142 = sadd.s32 %s141, 1
    %s143 = scalar_select %p140, %s141, %s142
    %p146 = pneg %p140
    %p147 = scmp.eq.s32.totalorder %s18, 1
    %p148 = por %p146, %p147
    %p149 = scmp.ne.s32.totalorder %s141, %s144
    %p150 = scmp.eq.s32.totalorder %s18, 0
    %p151 = por %p149, %p150
    %p152 = scmp.ne.s32.totalorder %s141, %s144
    %p153 = scmp.eq.s32.totalorder %s23, 1
    %p154 = por %p152, %p153
    %p155 = scmp.ne.s32.totalorder %s144, %s145
    %p156 = scmp.eq.s32.totalorder %s23, 0
    %p157 = por %p155, %p156
    %p158 = scmp.ne.s32.totalorder %s144, %s145
    %p159 = scmp.eq.s32.totalorder %s24, 1
    %p160 = por %p158, %p159
    %p162 = scmp.ne.s32.totalorder %s145, %s161
    %p163 = scmp.eq.s32.totalorder %s24, 0
    %p164 = por %p162, %p163
    %s165 = sadd.s32 %s26, %s27
    %s166 = sadd.s32 %s40, %s36
    %s167 = ssub.s32 %s25, %s44
    %s168 = ssub.s32 %s165, %s166
    %s169 = sor.u32 %s167, %s168
    %p170 = scmp.eq.s32.totalorder %s169, 0
    %s172 = sadd.s32 %s171, 1
    %s173 = scalar_select %p170, %s171, %s172
    %p176 = pneg %p170
    %p177 = scmp.eq.s32.totalorder %s18, 1
    %p178 = por %p176, %p177
    %p179 = scmp.ne.s32.totalorder %s171, %s174
    %p180 = scmp.eq.s32.totalorder %s18, 0
    %p181 = por %p179, %p180
    %p182 = scmp.ne.s32.totalorder %s171, %s174
    %p183 = scmp.eq.s32.totalorder %s23, 1
    %p184 = por %p182, %p183
    %p185 = scmp.ne.s32.totalorder %s174, %s175
    %p186 = scmp.eq.s32.totalorder %s23, 0
    %p187 = por %p185, %p186
    %p188 = scmp.ne.s32.totalorder %s174, %s175
    %p189 = scmp.eq.s32.totalorder %s24, 1
    %p190 = por %p188, %p189
    %p192 = scmp.ne.s32.totalorder %s175, %s191
    %p193 = scmp.eq.s32.totalorder %s24, 0
    %p194 = por %p192, %p193
    %s195 = sadd.s32 %s26, %s27
    %s196 = sadd.s32 %s40, %s36
    %s197 = ssub.s32 %s25, %s44
    %s198 = ssub.s32 %s195, %s196
    %s199 = sor.u32 %s197, %s198
    %p200 = scmp.eq.s32.totalorder %s199, 0
    %s202 = sadd.s32 %s201, 1
    %s203 = scalar_select %p200, %s201, %s202
    %p206 = pneg %p200
    %p207 = scmp.eq.s32.totalorder %s18, 1
    %p208 = por %p206, %p207
    %p209 = scmp.ne.s32.totalorder %s201, %s204
    %p210 = scmp.eq.s32.totalorder %s18, 0
    %p211 = por %p209, %p210
    %p212 = scmp.ne.s32.totalorder %s201, %s204
    %p213 = scmp.eq.s32.totalorder %s23, 1
    %p214 = por %p212, %p213
    %p215 = scmp.ne.s32.totalorder %s204, %s205
    %p216 = scmp.eq.s32.totalorder %s23, 0
    %p217 = por %p215, %p216
    %p218 = scmp.ne.s32.totalorder %s204, %s205
    %p219 = scmp.eq.s32.totalorder %s24, 1
    %p220 = por %p218, %p219
    %p222 = scmp.ne.s32.totalorder %s205, %s221
    %p223 = scmp.eq.s32.totalorder %s24, 0
    %p224 = por %p222, %p223
    %s225 = sadd.s32 %s26, %s27
    %s226 = sadd.s32 %s40, %s36
    %s227 = ssub.s32 %s25, %s44
    %s228 = ssub.s32 %s225, %s226
    %s229 = sor.u32 %s227, %s228
    %p230 = scmp.eq.s32.totalorder %s229, 0
    %s232 = sadd.s32 %s231, 1
    %s233 = scalar_select %p230, %s231, %s232
    %p236 = pneg %p230
    %p237 = scmp.eq.s32.totalorder %s18, 1
    %p238 = por %p236, %p237
    %p239 = scmp.ne.s32.totalorder %s231, %s234
    %p240 = scmp.eq.s32.totalorder %s18, 0
    %p241 = por %p239, %p240
    %p242 = scmp.ne.s32.totalorder %s231, %s234
    %p243 = scmp.eq.s32.totalorder %s23, 1
    %p244 = por %p242, %p243
    %p245 = scmp.ne.s32.totalorder %s234, %s235
    %p246 = scmp.eq.s32.totalorder %s23, 0
    %p247 = por %p245, %p246
    %p248 = scmp.ne.s32.totalorder %s234, %s235
    %p249 = scmp.eq.s32.totalorder %s24, 1
    %p250 = por %p248, %p249
    %p252 = scmp.ne.s32.totalorder %s235, %s251
    %p253 = scmp.eq.s32.totalorder %s24, 0
    %p254 = por %p252, %p253
    %s255 = ssub.s32 %s25, %s44
    %s256 = ssub.s32 %s26, %s40
    %s257 = sor.u32 %s255, %s256
    %p258 = scmp.eq.s32.totalorder %s257, 0
    %s260 = sadd.s32 %s259, 1
    %s261 = scalar_select %p258, %s259, %s260
    %p264 = pneg %p258
    %p265 = scmp.eq.s32.totalorder %s18, 1
    %p266 = por %p264, %p265
    %p267 = scmp.ne.s32.totalorder %s259, %s262
    %p268 = scmp.eq.s32.totalorder %s18, 0
    %p269 = por %p267, %p268
    %p270 = scmp.ne.s32.totalorder %s259, %s262
    %p271 = scmp.eq.s32.totalorder %s23, 1
    %p272 = por %p270, %p271
    %p273 = scmp.ne.s32.totalorder %s262, %s263
    %p274 = scmp.eq.s32.totalorder %s23, 0
    %p275 = por %p273, %p274
    %p276 = scmp.ne.s32.totalorder %s262, %s263
    %p277 = scmp.eq.s32.totalorder %s24, 1
    %p278 = por %p276, %p277
    %p280 = scmp.ne.s32.totalorder %s263, %s279
    %p281 = scmp.eq.s32.totalorder %s24, 0
    %p282 = por %p280, %p281
    %s283 = ssub.s32 %s25, %s44
    %s284 = ssub.s32 %s26, %s40
    %s285 = sor.u32 %s283, %s284
    %p286 = scmp.eq.s32.totalorder %s285, 0
    %s288 = sadd.s32 %s287, 1
    %s289 = scalar_select %p286, %s287, %s288
    %p292 = pneg %p286
    %p293 = scmp.eq.s32.totalorder %s18, 1
    %p294 = por %p292, %p293
    %p295 = scmp.ne.s32.totalorder %s287, %s290
    %p296 = scmp.eq.s32.totalorder %s18, 0
    %p297 = por %p295, %p296
    %p298 = scmp.ne.s32.totalorder %s287, %s290
    %p299 = scmp.eq.s32.totalorder %s23, 1
    %p300 = por %p298, %p299
    %p301 = scmp.ne.s32.totalorder %s290, %s291
    %p302 = scmp.eq.s32.totalorder %s23, 0
    %p303 = por %p301, %p302
    %p304 = scmp.ne.s32.totalorder %s290, %s291
    %p305 = scmp.eq.s32.totalorder %s24, 1
    %p306 = por %p304, %p305
    %p308 = scmp.ne.s32.totalorder %s291, %s307
    %p309 = scmp.eq.s32.totalorder %s24, 0
    %p310 = por %p308, %p309
    %s311 = ssub.s32 %s25, %s44
    %s312 = ssub.s32 %s26, %s40
    %s313 = sor.u32 %s311, %s312
    %p314 = scmp.eq.s32.totalorder %s313, 0
    %s316 = sadd.s32 %s315, 1
    %s317 = scalar_select %p314, %s315, %s316
    %p320 = pneg %p314
    %p321 = scmp.eq.s32.totalorder %s18, 1
    %p322 = por %p320, %p321
    %p323 = scmp.ne.s32.totalorder %s315, %s318
    %p324 = scmp.eq.s32.totalorder %s18, 0
    %p325 = por %p323, %p324
    %p326 = scmp.ne.s32.totalorder %s315, %s318
    %p327 = scmp.eq.s32.totalorder %s23, 1
    %p328 = por %p326, %p327
    %p329 = scmp.ne.s32.totalorder %s318, %s319
    %p330 = scmp.eq.s32.totalorder %s23, 0
    %p331 = por %p329, %p330
    %p332 = scmp.ne.s32.totalorder %s318, %s319
    %p333 = scmp.eq.s32.totalorder %s24, 1
    %p334 = por %p332, %p333
    %p336 = scmp.ne.s32.totalorder %s319, %s335
    %p337 = scmp.eq.s32.totalorder %s24, 0
    %p338 = por %p336, %p337
    %s339 = ssub.s32 %s25, %s44
    %s340 = ssub.s32 %s26, %s40
    %s341 = sor.u32 %s339, %s340
    %p342 = scmp.eq.s32.totalorder %s341, 0
    %s344 = sadd.s32 %s343, 1
    %s345 = scalar_select %p342, %s343, %s344
    %p348 = pneg %p342
    %p349 = scmp.eq.s32.totalorder %s18, 1
    %p350 = por %p348, %p349
    %p351 = scmp.ne.s32.totalorder %s343, %s346
    %p352 = scmp.eq.s32.totalorder %s18, 0
    %p353 = por %p351, %p352
    %p354 = scmp.ne.s32.totalorder %s343, %s346
    %p355 = scmp.eq.s32.totalorder %s23, 1
    %p356 = por %p354, %p355
    %p357 = scmp.ne.s32.totalorder %s346, %s347
    %p358 = scmp.eq.s32.totalorder %s23, 0
    %p359 = por %p357, %p358
    %p360 = scmp.ne.s32.totalorder %s346, %s347
    %p361 = scmp.eq.s32.totalorder %s24, 1
    %p362 = por %p360, %p361
    %p364 = scmp.ne.s32.totalorder %s347, %s363
    %p365 = scmp.eq.s32.totalorder %s24, 0
    %p366 = por %p364, %p365
    %s367 = ssub.s32 %s25, %s44
    %s368 = ssub.s32 %s26, %s40
    %s369 = sor.u32 %s367, %s368
    %p370 = scmp.eq.s32.totalorder %s369, 0
    %s372 = sadd.s32 %s371, 1
    %s373 = scalar_select %p370, %s371, %s372
    %p376 = pneg %p370
    %p377 = scmp.eq.s32.totalorder %s18, 1
    %p378 = por %p376, %p377
    %p379 = scmp.ne.s32.totalorder %s371, %s374
    %p380 = scmp.eq.s32.totalorder %s18, 0
    %p381 = por %p379, %p380
    %p382 = scmp.ne.s32.totalorder %s371, %s374
    %p383 = scmp.eq.s32.totalorder %s23, 1
    %p384 = por %p382, %p383
    %p385 = scmp.ne.s32.totalorder %s374, %s375
    %p386 = scmp.eq.s32.totalorder %s23, 0
    %p387 = por %p385, %p386
    %p388 = scmp.ne.s32.totalorder %s374, %s375
    %p389 = scmp.eq.s32.totalorder %s24, 1
    %p390 = por %p388, %p389
    %p392 = scmp.ne.s32.totalorder %s375, %s391
    %p393 = scmp.eq.s32.totalorder %s24, 0
    %p394 = por %p392, %p393
    %p395 = scmp.le.s32.totalorder 1, %s18
    %p396 = scmp.lt.s32.totalorder %s18, 3
    %p397 = pnand %p395, %p396
    %p398 = pneg %p397
    // Predicated region
    $region9: #{centernetv2_loss.1} parent=5 // pred_check
      _
    $region10: #{centernetv2_loss.1} parent=5 // pred_check_branch
      %400 = sbr.rel (%p397) target = $region12
    $region11: #{centernetv2_loss.1} parent=5 // pred_region
      %s401 = ssub.s32 %s18, 1
    $region12: #{centernetv2_loss.1} parent=5 // pred_fallthru
      _
    %p402 = scmp.lt.s32.totalorder %s18, 2
    // Predicated region
    $region13: #{centernetv2_loss.1} parent=5 // pred_check
      %p403 = pneg %p402
    $region14: #{centernetv2_loss.1} parent=5 // pred_check_branch
      %405 = sbr.rel (%p403) target = $region16
    $region15: #{centernetv2_loss.1} parent=5 // pred_region
      // Predicated region
      $region17: #{centernetv2_loss.1} parent=15 // pred_check
        %p406 = pneg %p61
      $region18: #{centernetv2_loss.1} parent=15 // pred_check_branch
        %408 = sbr.rel (%p406) target = $region20
      $region19: #{centernetv2_loss.1} parent=15 // pred_region
        %s409 = sadd.s32 %s26, %s27
        %p410 = scmp.lt.s32.totalorder %s25, 1
        %s411 = scalar_select %p410, %s25, 1
        %p412 = scmp.lt.s32.totalorder %s409, 0
        %s413 = scalar_select %p412, %s409, 0
        %s414 = sadd.s32 %s413, %s411
        %s415 = smul.addr %s414, 8
        %s416 = scalar_lea.vmem %s0, %s415
        %s417 = sadd.s32 %s26, %s27
      $region20: #{centernetv2_loss.1} parent=15 // pred_fallthru
        _
      // Predicated region
      $region21: #{centernetv2_loss.1} parent=15 // pred_check
        %p418 = pneg %p91
      $region22: #{centernetv2_loss.1} parent=15 // pred_check_branch
        %420 = sbr.rel (%p418) target = $region24
      $region23: #{centernetv2_loss.1} parent=15 // pred_region
        %s421 = sadd.s32 %s26, %s27
        %p422 = scmp.lt.s32.totalorder %s25, 1
        %s423 = scalar_select %p422, %s25, 1
        %p424 = scmp.lt.s32.totalorder %s421, 0
        %s425 = scalar_select %p424, %s421, 0
        %s426 = sadd.s32 %s425, %s423
        %s427 = smul.addr %s426, 8
        %s428 = scalar_lea.vmem %s1, %s427
        %s429 = sadd.s32 %s26, %s27
      $region24: #{centernetv2_loss.1} parent=15 // pred_fallthru
        _
      // Predicated region
      $region25: #{centernetv2_loss.1} parent=15 // pred_check
        %p430 = pneg %p121
      $region26: #{centernetv2_loss.1} parent=15 // pred_check_branch
        %432 = sbr.rel (%p430) target = $region28
      $region27: #{centernetv2_loss.1} parent=15 // pred_region
        %s433 = sadd.s32 %s26, %s27
        %p434 = scmp.lt.s32.totalorder %s25, 1
        %s435 = scalar_select %p434, %s25, 1
        %p436 = scmp.lt.s32.totalorder %s433, 0
        %s437 = scalar_select %p436, %s433, 0
        %s438 = sadd.s32 %s437, %s435
        %s439 = smul.addr %s438, 8
        %s440 = scalar_lea.vmem %s2, %s439
        %s441 = sadd.s32 %s26, %s27
      $region28: #{centernetv2_loss.1} parent=15 // pred_fallthru
        _
      // Predicated region
      $region29: #{centernetv2_loss.1} parent=15 // pred_check
        %p442 = pneg %p151
      $region30: #{centernetv2_loss.1} parent=15 // pred_check_branch
        %444 = sbr.rel (%p442) target = $region32
      $region31: #{centernetv2_loss.1} parent=15 // pred_region
        %s445 = sadd.s32 %s26, %s27
        %p446 = scmp.lt.s32.totalorder %s25, 1
        %s447 = scalar_select %p446, %s25, 1
        %p448 = scmp.lt.s32.totalorder %s445, 0
        %s449 = scalar_select %p448, %s445, 0
        %s450 = sadd.s32 %s449, %s447
        %s451 = smul.addr %s450, 8
        %s452 = scalar_lea.vmem %s3, %s451
        %s453 = sadd.s32 %s26, %s27
      $region32: #{centernetv2_loss.1} parent=15 // pred_fallthru
        _
      // Predicated region
      $region33: #{centernetv2_loss.1} parent=15 // pred_check
        %p454 = pneg %p181
      $region34: #{centernetv2_loss.1} parent=15 // pred_check_branch
        %456 = sbr.rel (%p454) target = $region36
      $region35: #{centernetv2_loss.1} parent=15 // pred_region
        %s457 = sadd.s32 %s26, %s27
        %p458 = scmp.lt.s32.totalorder %s25, 1
        %s459 = scalar_select %p458, %s25, 1
        %p460 = scmp.lt.s32.totalorder %s457, 0
        %s461 = scalar_select %p460, %s457, 0
        %s462 = sadd.s32 %s461, %s459
        %s463 = smul.addr %s462, 8
        %s464 = scalar_lea.vmem %s4, %s463
        %s465 = sadd.s32 %s26, %s27
      $region36: #{centernetv2_loss.1} parent=15 // pred_fallthru
        _
      // Predicated region
      $region37: #{centernetv2_loss.1} parent=15 // pred_check
        %p466 = pneg %p211
      $region38: #{centernetv2_loss.1} parent=15 // pred_check_branch
        %468 = sbr.rel (%p466) target = $region40
      $region39: #{centernetv2_loss.1} parent=15 // pred_region
        %s469 = sadd.s32 %s26, %s27
        %p470 = scmp.lt.s32.totalorder %s25, 1
        %s471 = scalar_select %p470, %s25, 1
        %p472 = scmp.lt.s32.totalorder %s469, 0
        %s473 = scalar_select %p472, %s469, 0
        %s474 = sadd.s32 %s473, %s471
        %s475 = smul.addr %s474, 8
        %s476 = scalar_lea.vmem %s5, %s475
        %s477 = sadd.s32 %s26, %s27
      $region40: #{centernetv2_loss.1} parent=15 // pred_fallthru
        _
      // Predicated region
      $region41: #{centernetv2_loss.1} parent=15 // pred_check
        %p478 = pneg %p241
      $region42: #{centernetv2_loss.1} parent=15 // pred_check_branch
        %480 = sbr.rel (%p478) target = $region44
      $region43: #{centernetv2_loss.1} parent=15 // pred_region
        %s481 = sadd.s32 %s26, %s27
        %p482 = scmp.lt.s32.totalorder %s25, 1
        %s483 = scalar_select %p482, %s25, 1
        %p484 = scmp.lt.s32.totalorder %s481, 0
        %s485 = scalar_select %p484, %s481, 0
        %s486 = sadd.s32 %s485, %s483
        %s487 = smul.addr %s486, 4
        %s488 = scalar_lea.vmem %s6, %s487
        %s489 = sadd.s32 %s26, %s27
      $region44: #{centernetv2_loss.1} parent=15 // pred_fallthru
        _
    $region16: #{centernetv2_loss.1} parent=5 // pred_fallthru
      _
    %p490 = scmp.le.s32.totalorder 1, %s18
    %p491 = scmp.lt.s32.totalorder %s18, 3
    %p492 = pnand %p490, %p491
    %p493 = pneg %p492
    // Predicated region
    $region45: #{centernetv2_loss.1} parent=5 // pred_check
      _
    $region46: #{centernetv2_loss.1} parent=5 // pred_check_branch
      %495 = sbr.rel (%p492) target = $region48
    $region47: #{centernetv2_loss.1} parent=5 // pred_region
      %s496 = ssub.s32 %s18, 1
      %s497 = sadd.s32 %s29, %s30
      %p498 = scmp.lt.s32.totalorder %s28, 1
      %s499 = scalar_select %p498, %s28, 1
      %p500 = scmp.lt.s32.totalorder %s497, 0
      %s501 = scalar_select %p500, %s497, 0
      %s502 = sadd.s32 %s501, %s499
      %s503 = smul.addr %s502, 8
      %s504 = scalar_lea.vmem %s0, %s503
      %p505 = pneg %p67
      %p506 = pneg %p64
      %s507 = sadd.s32 %s29, %s30
      %p508 = scmp.lt.s32.totalorder %s28, 1
      %s509 = scalar_select %p508, %s28, 1
      %p510 = scmp.lt.s32.totalorder %s507, 0
      %s511 = scalar_select %p510, %s507, 0
      %s512 = sadd.s32 %s511, %s509
      %s513 = smul.addr %s512, 8
      %s514 = scalar_lea.vmem %s1, %s513
      %p515 = pneg %p97
      %p516 = pneg %p94
      %s517 = sadd.s32 %s29, %s30
      %p518 = scmp.lt.s32.totalorder %s28, 1
      %s519 = scalar_select %p518, %s28, 1
      %p520 = scmp.lt.s32.totalorder %s517, 0
      %s521 = scalar_select %p520, %s517, 0
      %s522 = sadd.s32 %s521, %s519
      %s523 = smul.addr %s522, 8
      %s524 = scalar_lea.vmem %s2, %s523
      %p525 = pneg %p127
      %p526 = pneg %p124
      %s527 = sadd.s32 %s29, %s30
      %p528 = scmp.lt.s32.totalorder %s28, 1
      %s529 = scalar_select %p528, %s28, 1
      %p530 = scmp.lt.s32.totalorder %s527, 0
      %s531 = scalar_select %p530, %s527, 0
      %s532 = sadd.s32 %s531, %s529
      %s533 = smul.addr %s532, 8
      %s534 = scalar_lea.vmem %s3, %s533
      %p535 = pneg %p157
      %p536 = pneg %p154
      %s537 = sadd.s32 %s29, %s30
      %p538 = scmp.lt.s32.totalorder %s28, 1
      %s539 = scalar_select %p538, %s28, 1
      %p540 = scmp.lt.s32.totalorder %s537, 0
      %s541 = scalar_select %p540, %s537, 0
      %s542 = sadd.s32 %s541, %s539
      %s543 = smul.addr %s542, 8
      %s544 = scalar_lea.vmem %s4, %s543
      %p545 = pneg %p187
      %p546 = pneg %p184
      %s547 = sadd.s32 %s29, %s30
      %p548 = scmp.lt.s32.totalorder %s28, 1
      %s549 = scalar_select %p548, %s28, 1
      %p550 = scmp.lt.s32.totalorder %s547, 0
      %s551 = scalar_select %p550, %s547, 0
      %s552 = sadd.s32 %s551, %s549
      %s553 = smul.addr %s552, 8
      %s554 = scalar_lea.vmem %s5, %s553
      %p555 = pneg %p217
      %p556 = pneg %p214
      %s557 = sadd.s32 %s29, %s30
      %p558 = scmp.lt.s32.totalorder %s28, 1
      %s559 = scalar_select %p558, %s28, 1
      %p560 = scmp.lt.s32.totalorder %s557, 0
      %s561 = scalar_select %p560, %s557, 0
      %s562 = sadd.s32 %s561, %s559
      %s563 = smul.addr %s562, 4
      %s564 = scalar_lea.vmem %s6, %s563
      %p565 = pneg %p247
      %p566 = pneg %p244
      %p567 = pneg %p275
      %p568 = pneg %p272
      %p569 = scmp.lt.s32.totalorder %s28, 1
      %s570 = scalar_select %p569, %s28, 1
      %p571 = scmp.lt.s32.totalorder %s29, 0
      %s572 = scalar_select %p571, %s29, 0
      %s573 = sadd.s32 %s572, %s570
      %s574 = smul.addr %s573, 8
      %s575 = scalar_lea.vmem %s7, %s574
      %p576 = pneg %p303
      %p577 = pneg %p300
      %p578 = scmp.lt.s32.totalorder %s28, 1
      %s579 = scalar_select %p578, %s28, 1
      %p580 = scmp.lt.s32.totalorder %s29, 0
      %s581 = scalar_select %p580, %s29, 0
      %s582 = sadd.s32 %s581, %s579
      %s583 = smul.addr %s582, 8
      %s584 = scalar_lea.vmem %s8, %s583
      %p585 = pneg %p331
      %p586 = pneg %p328
      %p587 = scmp.lt.s32.totalorder %s28, 1
      %s588 = scalar_select %p587, %s28, 1
      %p589 = scmp.lt.s32.totalorder %s29, 0
      %s590 = scalar_select %p589, %s29, 0
      %s591 = sadd.s32 %s590, %s588
      %s592 = smul.addr %s591, 8
      %s593 = scalar_lea.vmem %s9, %s592
      %p594 = pneg %p359
      %p595 = pneg %p356
      %p596 = scmp.lt.s32.totalorder %s28, 1
      %s597 = scalar_select %p596, %s28, 1
      %p598 = scmp.lt.s32.totalorder %s29, 0
      %s599 = scalar_select %p598, %s29, 0
      %s600 = sadd.s32 %s599, %s597
      %s601 = smul.addr %s600, 8
      %s602 = scalar_lea.vmem %s10, %s601
      %p603 = pneg %p387
      %p604 = pneg %p384
      %p605 = scmp.lt.s32.totalorder %s28, 1
      %s606 = scalar_select %p605, %s28, 1
      %p607 = scmp.lt.s32.totalorder %s29, 0
      %s608 = scalar_select %p607, %s29, 0
      %s609 = sadd.s32 %s608, %s606
      %s610 = smul.addr %s609, 8
      %s611 = scalar_lea.vmem %s11, %s610
      %s612 = sadd.s32 %s29, %s30
      %p613 = scmp.lt.s32.totalorder %s28, 1
      %s614 = scalar_select %p613, %s28, 1
      %p615 = scmp.lt.s32.totalorder %s612, 0
      %s616 = scalar_select %p615, %s612, 0
      %s617 = sadd.s32 %s616, %s614
      %s618 = smul.addr %s617, 8
      %s619 = scalar_lea.vmem %s0, %s618
      %s620 = sadd.s32 %s29, %s30
      %s621 = sadd.s32 %s29, %s30
      %p622 = scmp.lt.s32.totalorder %s28, 1
      %s623 = scalar_select %p622, %s28, 1
      %p624 = scmp.lt.s32.totalorder %s621, 0
      %s625 = scalar_select %p624, %s621, 0
      %s626 = sadd.s32 %s625, %s623
      %s627 = smul.addr %s626, 8
      %s628 = scalar_lea.vmem %s1, %s627
      %s629 = sadd.s32 %s29, %s30
      %s630 = sadd.s32 %s29, %s30
      %p631 = scmp.lt.s32.totalorder %s28, 1
      %s632 = scalar_select %p631, %s28, 1
      %p633 = scmp.lt.s32.totalorder %s630, 0
      %s634 = scalar_select %p633, %s630, 0
      %s635 = sadd.s32 %s634, %s632
      %s636 = smul.addr %s635, 8
      %s637 = scalar_lea.vmem %s2, %s636
      %s638 = sadd.s32 %s29, %s30
      %s639 = sadd.s32 %s29, %s30
      %p640 = scmp.lt.s32.totalorder %s28, 1
      %s641 = scalar_select %p640, %s28, 1
      %p642 = scmp.lt.s32.totalorder %s639, 0
      %s643 = scalar_select %p642, %s639, 0
      %s644 = sadd.s32 %s643, %s641
      %s645 = smul.addr %s644, 8
      %s646 = scalar_lea.vmem %s3, %s645
      %s647 = sadd.s32 %s29, %s30
      %s648 = sadd.s32 %s29, %s30
      %p649 = scmp.lt.s32.totalorder %s28, 1
      %s650 = scalar_select %p649, %s28, 1
      %p651 = scmp.lt.s32.totalorder %s648, 0
      %s652 = scalar_select %p651, %s648, 0
      %s653 = sadd.s32 %s652, %s650
      %s654 = smul.addr %s653, 8
      %s655 = scalar_lea.vmem %s4, %s654
      %s656 = sadd.s32 %s29, %s30
      %s657 = sadd.s32 %s29, %s30
      %p658 = scmp.lt.s32.totalorder %s28, 1
      %s659 = scalar_select %p658, %s28, 1
      %p660 = scmp.lt.s32.totalorder %s657, 0
      %s661 = scalar_select %p660, %s657, 0
      %s662 = sadd.s32 %s661, %s659
      %s663 = smul.addr %s662, 8
      %s664 = scalar_lea.vmem %s5, %s663
      %s665 = sadd.s32 %s29, %s30
      %s666 = sadd.s32 %s29, %s30
      %p667 = scmp.lt.s32.totalorder %s28, 1
      %s668 = scalar_select %p667, %s28, 1
      %p669 = scmp.lt.s32.totalorder %s666, 0
      %s670 = scalar_select %p669, %s666, 0
      %s671 = sadd.s32 %s670, %s668
      %s672 = smul.addr %s671, 4
      %s673 = scalar_lea.vmem %s6, %s672
      %s674 = sadd.s32 %s29, %s30
      %p675 = scmp.lt.s32.totalorder %s28, 1
      %s676 = scalar_select %p675, %s28, 1
      %p677 = scmp.lt.s32.totalorder %s29, 0
      %s678 = scalar_select %p677, %s29, 0
      %s679 = sadd.s32 %s678, %s676
      %s680 = smul.addr %s679, 8
      %s681 = scalar_lea.vmem %s7, %s680
      %p682 = scmp.lt.s32.totalorder %s28, 1
      %s683 = scalar_select %p682, %s28, 1
      %p684 = scmp.lt.s32.totalorder %s29, 0
      %s685 = scalar_select %p684, %s29, 0
      %s686 = sadd.s32 %s685, %s683
      %s687 = smul.addr %s686, 8
      %s688 = scalar_lea.vmem %s8, %s687
      %p689 = scmp.lt.s32.totalorder %s28, 1
      %s690 = scalar_select %p689, %s28, 1
      %p691 = scmp.lt.s32.totalorder %s29, 0
      %s692 = scalar_select %p691, %s29, 0
      %s693 = sadd.s32 %s692, %s690
      %s694 = smul.addr %s693, 8
      %s695 = scalar_lea.vmem %s9, %s694
      %p696 = scmp.lt.s32.totalorder %s28, 1
      %s697 = scalar_select %p696, %s28, 1
      %p698 = scmp.lt.s32.totalorder %s29, 0
      %s699 = scalar_select %p698, %s29, 0
      %s700 = sadd.s32 %s699, %s697
      %s701 = smul.addr %s700, 8
      %s702 = scalar_lea.vmem %s10, %s701
      %p703 = scmp.lt.s32.totalorder %s28, 1
      %s704 = scalar_select %p703, %s28, 1
      %p705 = scmp.lt.s32.totalorder %s29, 0
      %s706 = scalar_select %p705, %s29, 0
      %s707 = sadd.s32 %s706, %s704
      %s708 = smul.addr %s707, 8
      %s709 = scalar_lea.vmem %s11, %s708
      %p710 = scmp.eq.s32.totalorder %s30, 0
      // Predicated region
      $region49: #{centernetv2_loss.1} parent=47 // pred_check
        %p711 = pneg %p710
      $region50: #{centernetv2_loss.1} parent=47 // pred_check_branch
        %713 = sbr.rel (%p711) target = $region52
      $region51: #{centernetv2_loss.1} parent=47 // pred_region
        %714 = vst [vmem:[%s681] sm:$0xff] 0.0
        %715 = vst [vmem:[%s688] sm:$0xff] 0.0
        %vm716 = vcmask 523264
        %717 = vst.msk [vmem:[%s695] sm:$0xff] %vm716, 0.0
        %718 = vst.msk [vmem:[%s702] sm:$0xff] %vm716, 0.0
        %719 = vst.msk [vmem:[%s709] sm:$0xff] %vm716, 0.0
      $region52: #{centernetv2_loss.1} parent=47 // pred_fallthru
        _
      %v720 = vld [vmem:[%s619] sm:$0xff]
      %v721 = vld [vmem:[%s628] sm:$0xff]
      %v722 = vand.u32 2147483647, %v720
      %v723 = vsub.f32 0.0, %v722
      %v724 = vmul.f32 %v723, 1.442695
      %v725 = vpow.pop %v724
      %v726 = vmin.f32 %v720, 0.0
      %v727 = vadd.f32 %v725, 1.0
      %v728 = vlog2.pop %v727
      %v729 = vmul.f32 %v728, 0.6931472
      %v730 = vsub.f32 %v726, %v729
      %v731 = vsub.f32 %v730, %v720
      %v732 = vmul.f32 %v730, 1.442695
      %v733 = vpow.pop %v732
      %v734 = vsub.f32 1.0, %v733
      %v735 = vsub.f32 1.0, %v721
      %v736 = vmul.f32 %v735, %v735
      %v737 = vmul.f32 %v736, %v736
      %v738 = vmul.f32 %v734, %v734
      %v739 = vmul.f32 %v730, %v738
      %v740 = vmul.f32 %v733, %v733
      %v741 = vmul.f32 %v731, %v740
      %v742 = vmul.f32 %v741, %v737
      %vm743 = vcmp.eq.f32.partialorder %v721, 1.0
      %v744 = vsel %vm743, %v739, %v742
      %v745 = vld [vmem:[%s681] sm:$0xff]
      %v746 = vadd.f32 %v745, %v744
      %747 = vst [vmem:[%s681] sm:$0xff] %v746
      %v748 = vld [vmem:[%s688] sm:$0xff]
      %v749 = vsel %vm743, 1, 0
      %v750 = vcvt.s32.f32 %v749
      %v751 = vadd.f32 %v748, %v750
      %752 = vst [vmem:[%s688] sm:$0xff] %v751
      %v753 = vld [vmem:[%s673] sm:$0xf]
      %v755 = vrot.slane %v753, 4
      %vm757 = vcmask 1043456
      %v758 = vsel %vm757, %v753, %v755
      %v759 = vld [vmem:[%s695] sm:$0xff]
      %v760 = vld [vmem:[%s637] sm:$0xff]
      %v761 = vld [vmem:[%s646] sm:$0xff]
      %v762 = vsub.f32 %v760, %v761
      %v763 = vand.u32 2147483647, %v762
      %vm764 = vcmp.lt.f32.partialorder %v763, 1.0
      %v765 = vmul.f32 %v763, %v763
      %v766 = vmul.f32 %v765, 0.5
      %v767 = vsub.f32 %v763, 0.5
      %v768 = vsel %vm764, %v766, %v767
      %v769 = vmul.f32 %v768, %v758
      %v770 = vadd.f32 %v759, %v769
      %vm771 = vcmask 523264
      %772 = vst.msk [vmem:[%s695] sm:$0xff] %vm771, %v770
      %v773 = vld [vmem:[%s702] sm:$0xff]
      %v774 = vld [vmem:[%s655] sm:$0xff]
      %v775 = vld [vmem:[%s664] sm:$0xff]
      %v776 = vsub.f32 %v774, %v775
      %v777 = vand.u32 2147483647, %v776
      %vm778 = vcmp.lt.f32.partialorder %v777, 1.0
      %v779 = vmul.f32 %v777, %v777
      %v780 = vmul.f32 %v779, 0.5
      %v781 = vsub.f32 %v777, 0.5
      %v782 = vsel %vm778, %v780, %v781
      %v783 = vmul.f32 %v782, %v758
      %v784 = vadd.f32 %v773, %v783
      %785 = vst.msk [vmem:[%s702] sm:$0xff] %vm771, %v784
      %v786 = vld [vmem:[%s709] sm:$0xff]
      %v787 = vadd.f32 %v786, %v758
      %788 = vst.msk [vmem:[%s709] sm:$0xff] %vm771, %v787
      %p789 = scmp.lt.s32.totalorder %s28, 1
      %s790 = scalar_select %p789, %s28, 1
      %p791 = scmp.lt.s32.totalorder %s29, 0
      %s792 = scalar_select %p791, %s29, 0
      %s793 = sadd.s32 %s792, %s790
      %s794 = smul.addr %s793, 8
      %s795 = scalar_lea.vmem %s7, %s794
      %p796 = scmp.lt.s32.totalorder %s28, 1
      %s797 = scalar_select %p796, %s28, 1
      %p798 = scmp.lt.s32.totalorder %s29, 0
      %s799 = scalar_select %p798, %s29, 0
      %s800 = sadd.s32 %s799, %s797
      %s801 = smul.addr %s800, 8
      %s802 = scalar_lea.vmem %s8, %s801
      %p803 = scmp.lt.s32.totalorder %s28, 1
      %s804 = scalar_select %p803, %s28, 1
      %p805 = scmp.lt.s32.totalorder %s29, 0
      %s806 = scalar_select %p805, %s29, 0
      %s807 = sadd.s32 %s806, %s804
      %s808 = smul.addr %s807, 8
      %s809 = scalar_lea.vmem %s9, %s808
      %p810 = scmp.lt.s32.totalorder %s28, 1
      %s811 = scalar_select %p810, %s28, 1
      %p812 = scmp.lt.s32.totalorder %s29, 0
      %s813 = scalar_select %p812, %s29, 0
      %s814 = sadd.s32 %s813, %s811
      %s815 = smul.addr %s814, 8
      %s816 = scalar_lea.vmem %s10, %s815
      %p817 = scmp.lt.s32.totalorder %s28, 1
      %s818 = scalar_select %p817, %s28, 1
      %p819 = scmp.lt.s32.totalorder %s29, 0
      %s820 = scalar_select %p819, %s29, 0
      %s821 = sadd.s32 %s820, %s818
      %s822 = smul.addr %s821, 8
      %s823 = scalar_lea.vmem %s11, %s822
      // Predicated region
      $region53: #{centernetv2_loss.1} parent=47 // pred_check
        %p824 = pneg %p272
      $region54: #{centernetv2_loss.1} parent=47 // pred_check_branch
        %826 = sbr.rel (%p824) target = $region56
      $region55: #{centernetv2_loss.1} parent=47 // pred_region
        _
      $region56: #{centernetv2_loss.1} parent=47 // pred_fallthru
        _
      // Predicated region
      $region57: #{centernetv2_loss.1} parent=47 // pred_check
        %p827 = pneg %p300
      $region58: #{centernetv2_loss.1} parent=47 // pred_check_branch
        %829 = sbr.rel (%p827) target = $region60
      $region59: #{centernetv2_loss.1} parent=47 // pred_region
        _
      $region60: #{centernetv2_loss.1} parent=47 // pred_fallthru
        _
      // Predicated region
      $region61: #{centernetv2_loss.1} parent=47 // pred_check
        %p830 = pneg %p328
      $region62: #{centernetv2_loss.1} parent=47 // pred_check_branch
        %832 = sbr.rel (%p830) target = $region64
      $region63: #{centernetv2_loss.1} parent=47 // pred_region
        _
      $region64: #{centernetv2_loss.1} parent=47 // pred_fallthru
        _
      // Predicated region
      $region65: #{centernetv2_loss.1} parent=47 // pred_check
        %p833 = pneg %p356
      $region66: #{centernetv2_loss.1} parent=47 // pred_check_branch
        %835 = sbr.rel (%p833) target = $region68
      $region67: #{centernetv2_loss.1} parent=47 // pred_region
        _
      $region68: #{centernetv2_loss.1} parent=47 // pred_fallthru
        _
      // Predicated region
      $region69: #{centernetv2_loss.1} parent=47 // pred_check
        %p836 = pneg %p384
      $region70: #{centernetv2_loss.1} parent=47 // pred_check_branch
        %838 = sbr.rel (%p836) target = $region72
      $region71: #{centernetv2_loss.1} parent=47 // pred_region
        _
      $region72: #{centernetv2_loss.1} parent=47 // pred_fallthru
        _
    $region48: #{centernetv2_loss.1} parent=5 // pred_fallthru
      _
    %p839 = scmp.le.s32.totalorder 2, %s18
    // Predicated region
    $region73: #{centernetv2_loss.1} parent=5 // pred_check
      %p840 = pneg %p839
    $region74: #{centernetv2_loss.1} parent=5 // pred_check_branch
      %842 = sbr.rel (%p840) target = $region76
    $region75: #{centernetv2_loss.1} parent=5 // pred_region
      %s843 = ssub.s32 %s18, 2
      // Predicated region
      $region77: #{centernetv2_loss.1} parent=75 // pred_check
        %p844 = pneg %p278
      $region78: #{centernetv2_loss.1} parent=75 // pred_check_branch
        %846 = sbr.rel (%p844) target = $region80
      $region79: #{centernetv2_loss.1} parent=75 // pred_region
        %p847 = scmp.lt.s32.totalorder %s31, 1
        %s848 = scalar_select %p847, %s31, 1
        %p849 = scmp.lt.s32.totalorder %s32, 0
        %s850 = scalar_select %p849, %s32, 0
        %s851 = sadd.s32 %s850, %s848
        %s852 = smul.addr %s851, 8
        %s853 = scalar_lea.vmem %s7, %s852
      $region80: #{centernetv2_loss.1} parent=75 // pred_fallthru
        _
      // Predicated region
      $region81: #{centernetv2_loss.1} parent=75 // pred_check
        %p854 = pneg %p306
      $region82: #{centernetv2_loss.1} parent=75 // pred_check_branch
        %856 = sbr.rel (%p854) target = $region84
      $region83: #{centernetv2_loss.1} parent=75 // pred_region
        %p857 = scmp.lt.s32.totalorder %s31, 1
        %s858 = scalar_select %p857, %s31, 1
        %p859 = scmp.lt.s32.totalorder %s32, 0
        %s860 = scalar_select %p859, %s32, 0
        %s861 = sadd.s32 %s860, %s858
        %s862 = smul.addr %s861, 8
        %s863 = scalar_lea.vmem %s8, %s862
      $region84: #{centernetv2_loss.1} parent=75 // pred_fallthru
        _
      // Predicated region
      $region85: #{centernetv2_loss.1} parent=75 // pred_check
        %p864 = pneg %p334
      $region86: #{centernetv2_loss.1} parent=75 // pred_check_branch
        %866 = sbr.rel (%p864) target = $region88
      $region87: #{centernetv2_loss.1} parent=75 // pred_region
        %p867 = scmp.lt.s32.totalorder %s31, 1
        %s868 = scalar_select %p867, %s31, 1
        %p869 = scmp.lt.s32.totalorder %s32, 0
        %s870 = scalar_select %p869, %s32, 0
        %s871 = sadd.s32 %s870, %s868
        %s872 = smul.addr %s871, 8
        %s873 = scalar_lea.vmem %s9, %s872
      $region88: #{centernetv2_loss.1} parent=75 // pred_fallthru
        _
      // Predicated region
      $region89: #{centernetv2_loss.1} parent=75 // pred_check
        %p874 = pneg %p362
      $region90: #{centernetv2_loss.1} parent=75 // pred_check_branch
        %876 = sbr.rel (%p874) target = $region92
      $region91: #{centernetv2_loss.1} parent=75 // pred_region
        %p877 = scmp.lt.s32.totalorder %s31, 1
        %s878 = scalar_select %p877, %s31, 1
        %p879 = scmp.lt.s32.totalorder %s32, 0
        %s880 = scalar_select %p879, %s32, 0
        %s881 = sadd.s32 %s880, %s878
        %s882 = smul.addr %s881, 8
        %s883 = scalar_lea.vmem %s10, %s882
      $region92: #{centernetv2_loss.1} parent=75 // pred_fallthru
        _
      // Predicated region
      $region93: #{centernetv2_loss.1} parent=75 // pred_check
        %p884 = pneg %p390
      $region94: #{centernetv2_loss.1} parent=75 // pred_check_branch
        %886 = sbr.rel (%p884) target = $region96
      $region95: #{centernetv2_loss.1} parent=75 // pred_region
        %p887 = scmp.lt.s32.totalorder %s31, 1
        %s888 = scalar_select %p887, %s31, 1
        %p889 = scmp.lt.s32.totalorder %s32, 0
        %s890 = scalar_select %p889, %s32, 0
        %s891 = sadd.s32 %s890, %s888
        %s892 = smul.addr %s891, 8
        %s893 = scalar_lea.vmem %s11, %s892
      $region96: #{centernetv2_loss.1} parent=75 // pred_fallthru
        _
    $region76: #{centernetv2_loss.1} parent=5 // pred_fallthru
      _
  $region6: #{centernetv2_loss.1} parent=0 // loop_footer
    %s22 = sadd.s32 1, %s18
  $region7: #{centernetv2_loss.1} parent=0 // loop_footer_branch
    %17 = sbr.rel target = $region3
  $region8: #{centernetv2_loss.1} parent=0 // loop_exit
    _

</llo_original>
